<compile_context>
chip_gen: v7x
topology: tpu7x:2x2x1
jax: 0.10.0
libtpu: 0.0.40
codegen_flags: <defaults>
</compile_context>

<pallas_src>
import functools

import jax
import jax.numpy as jnp
from jax.experimental import pallas as pl
from jax.experimental.pallas import tpu as pltpu

_LANE = 128         # TPU lane width (last dim)
_SUBLANE = 8        # f32 sublane width (second-to-last dim)
_MAX_TILE_B = 1024  # rows per grid step (~0.5 MiB f32 output tile, tiny vs VMEM)

_HIGH = jax.lax.Precision.HIGHEST


def _round_up(x, m):
    return (x + m - 1) // m * m


def _batch_tiling(b):
    """(padded_batch, batch_tile).

    Single tile when it fits; otherwise at least 2 grid steps (so the
    'parallel' axis can shard across both TensorCores on v7x), capped at
    _MAX_TILE_B rows per step.
    """
    bp = _round_up(max(b, 1), _SUBLANE)
    if bp <= _MAX_TILE_B:
        return bp, bp
    tb = min(_MAX_TILE_B, _round_up(pl.cdiv(bp, 2), _SUBLANE))
    bp = _round_up(bp, tb)
    return bp, tb


# ---------------------------------------------------------------------------
# Kernels
# ---------------------------------------------------------------------------
def _fused_mlp_kernel(x_ref, w1_ref, b1_ref, w2_ref, b2_ref, out_ref):
    """out = relu(x @ w1 + b1) @ w2 + b2  (x keeps its real, un-padded K)."""
    h = jnp.dot(x_ref[...], w1_ref[...],
                preferred_element_type=jnp.float32, precision=_HIGH)
    h = jnp.maximum(h + b1_ref[...], 0.0)                 # bias + ReLU on VPU
    out = jnp.dot(h, w2_ref[...],
                  preferred_element_type=jnp.float32, precision=_HIGH)
    out_ref[...] = (out + b2_ref[...]).astype(out_ref.dtype)


def _onehot_mlp_kernel(idx_ref, w1_ref, b1_ref, w2_ref, b2_ref, out_ref):
    """Integer-message path, fully in-kernel.

    One-hot is built in registers (iota == idx) -> exact torch scatter
    semantics (out-of-range index gives a zero row, no clamping) and fed to
    the MXU against the VMEM-resident msg_receiver weight. Only 4 B/row of
    index data ever crosses HBM.
    """
    tb = idx_ref.shape[0]
    msg_dim = w1_ref.shape[0]
    iota = jax.lax.broadcasted_iota(jnp.int32, (tb, msg_dim), 1)
    onehot = (iota == idx_ref[...]).astype(jnp.float32)   # broadcast (tb,1)
    h = jnp.dot(onehot, w1_ref[...],
                preferred_element_type=jnp.float32, precision=_HIGH)
    h = jnp.maximum(h + b1_ref[...], 0.0)
    out = jnp.dot(h, w2_ref[...],
                  preferred_element_type=jnp.float32, precision=_HIGH)
    out_ref[...] = (out + b2_ref[...]).astype(out_ref.dtype)


# ---------------------------------------------------------------------------
# Jitted wrappers
# ---------------------------------------------------------------------------
@functools.partial(jax.jit, static_argnames=("out_dim",))
def fused_linear_relu_linear(x, w1, b1, w2, b2, *, out_dim):
    """x: [B, Din] (un-padded K);  w1: [Din, Hp];  b1: [1, Hp];
    w2: [Hp, Np];  b2: [1, Np].  Returns [B, out_dim]."""
    b, din = x.shape
    h_pad = w1.shape[1]
    dout_pad = w2.shape[1]
    bp, tb = _batch_tiling(b)
    if bp != b:                                   # static check, no-op otherwise
        x = jnp.pad(x, ((0, bp - b), (0, 0)))

    out = pl.pallas_call(
        _fused_mlp_kernel,
        out_shape=jax.ShapeDtypeStruct((bp, dout_pad), x.dtype),
        grid=(bp // tb,),
        in_specs=[
            pl.BlockSpec((tb, din), lambda i: (i, 0)),        # full (tiny) K dim
            pl.BlockSpec((din, h_pad), lambda i: (0, 0)),     # VMEM-resident
            pl.BlockSpec((1, h_pad), lambda i: (0, 0)),       # across the grid
            pl.BlockSpec((h_pad, dout_pad), lambda i: (0, 0)),
            pl.BlockSpec((1, dout_pad), lambda i: (0, 0)),
        ],
        out_specs=pl.BlockSpec((tb, dout_pad), lambda i: (i, 0)),
        compiler_params=pltpu.CompilerParams(
            dimension_semantics=("parallel",)),
    )(x, w1, b1, w2, b2)
    return out[:b, :out_dim]


@functools.partial(jax.jit, static_argnames=("out_dim",))
def indexed_relu_linear(idx, w1, b1, w2, b2, *, out_dim):
    """Integer-msg path: only the int32 index crosses HBM; the one-hot matmul,
    bias, relu and second linear all run inside one kernel."""
    b = idx.shape[0]
    msg_dim, h_pad = w1.shape
    dout_pad = w2.shape[1]
    bp, tb = _batch_tiling(b)
    idx2 = idx.astype(jnp.int32).reshape(b, 1)
    if bp != b:
        idx2 = jnp.pad(idx2, ((0, bp - b), (0, 0)), constant_values=-1)

    out = pl.pallas_call(
        _onehot_mlp_kernel,
        out_shape=jax.ShapeDtypeStruct((bp, dout_pad), jnp.float32),
        grid=(bp // tb,),
        in_specs=[
            pl.BlockSpec((tb, 1), lambda i: (i, 0)),           # 4 B per row
            pl.BlockSpec((msg_dim, h_pad), lambda i: (0, 0)),  # VMEM-resident
            pl.BlockSpec((1, h_pad), lambda i: (0, 0)),
            pl.BlockSpec((h_pad, dout_pad), lambda i: (0, 0)),
            pl.BlockSpec((1, dout_pad), lambda i: (0, 0)),
        ],
        out_specs=pl.BlockSpec((tb, dout_pad), lambda i: (i, 0)),
        compiler_params=pltpu.CompilerParams(
            dimension_semantics=("parallel",)),
    )(idx2, w1, b1, w2, b2)
    return out[:b, :out_dim]


# ---------------------------------------------------------------------------
# Parameter init (torch.nn.Linear defaults): K kept real, N padded to 128
# ---------------------------------------------------------------------------
def _init_linear(key, in_dim, out_dim, *, in_pad=None, dtype=jnp.float32):
    """U(-1/sqrt(in), 1/sqrt(in)). Weight stored as [in_pad, out_pad] (rows
    beyond in_dim and cols beyond out_dim are zero), bias as [1, out_pad]."""
    kw, kb = jax.random.split(key)
    bound = 1.0 / float(in_dim) ** 0.5
    w = jax.random.uniform(kw, (in_dim, out_dim), dtype, -bound, bound)
    b = jax.random.uniform(kb, (out_dim,), dtype, -bound, bound)
    in_pad = in_dim if in_pad is None else in_pad
    out_pad = _round_up(out_dim, _LANE)
    w_pad = jnp.zeros((in_pad, out_pad), dtype).at[:in_dim, :out_dim].set(w)
    b_pad = jnp.zeros((1, out_pad), dtype).at[0, :out_dim].set(b)
    return w_pad, b_pad


class SoftmaxAgent:
    """JAX/Pallas port of the PyTorch SoftmaxAgent forward pass."""

    def __init__(self, msg_dim, hidden_dim, color_dim, perception_dim, key):
        self.msg_dim = msg_dim
        self.hidden_dim = hidden_dim
        self.color_dim = color_dim
        self.perception_dim = perception_dim
        h_pad = _round_up(hidden_dim, _LANE)   # hidden is an N dim (in-kernel only)
        k1, k2, k3, k4 = jax.random.split(key, 4)
        # perception_embedding: Linear(perception_dim -> hidden_dim), real K
        self.pe_w, self.pe_b = _init_linear(k1, perception_dim, hidden_dim)
        # msg_creator: Linear(hidden_dim -> msg_dim), K must match padded hidden
        self.mc_w, self.mc_b = _init_linear(k2, hidden_dim, msg_dim, in_pad=h_pad)
        # msg_receiver: Linear(msg_dim -> hidden_dim), real K
        self.mr_w, self.mr_b = _init_linear(k3, msg_dim, hidden_dim)
        # color_estimator: Linear(hidden_dim -> color_dim), K must match padded hidden
        self.ce_w, self.ce_b = _init_linear(k4, hidden_dim, color_dim, in_pad=h_pad)

    def forward(self, perception=None, msg=None, tau=1 / 3, test_time=False):
        # tau / test_time are unused in the reference forward as well.
        if perception is not None:
            # logits = msg_creator(relu(perception_embedding(perception)))
            return fused_linear_relu_linear(
                perception, self.pe_w, self.pe_b, self.mc_w, self.mc_b,
                out_dim=self.msg_dim)
        if msg is not None:
            if jnp.issubdtype(msg.dtype, jnp.integer):
                # torch.LongTensor path: one-hot built in-kernel and fed to MXU.
                return indexed_relu_linear(
                    msg, self.mr_w, self.mr_b, self.ce_w, self.ce_b,
                    out_dim=self.color_dim)
            # color_logits = color_estimator(relu(msg_receiver(msg)))
            return fused_linear_relu_linear(
                msg, self.mr_w, self.mr_b, self.ce_w, self.ce_b,
                out_dim=self.color_dim)
        return None

    __call__ = forward


if __name__ == "__main__":
    key = jax.random.PRNGKey(0)
    k_params, k_perc, k_msg, k_idx, k_perc2 = jax.random.split(key, 5)

    msg_dim, hidden_dim, color_dim, perception_dim = 16, 32, 8, 3
    batch = 8

    agent = SoftmaxAgent(msg_dim, hidden_dim, color_dim, perception_dim, k_params)

    # Un-padded parameter views for the pure-JAX references.
    pe_w = agent.pe_w[:perception_dim, :hidden_dim]
    pe_b = agent.pe_b[0, :hidden_dim]
    mc_w = agent.mc_w[:hidden_dim, :msg_dim]
    mc_b = agent.mc_b[0, :msg_dim]
    mr_w = agent.mr_w[:msg_dim, :hidden_dim]
    mr_b = agent.mr_b[0, :hidden_dim]
    ce_w = agent.ce_w[:hidden_dim, :color_dim]
    ce_b = agent.ce_b[0, :color_dim]

    def mlp_ref(x, w1, b1, w2, b2):
        h = jnp.maximum(jnp.dot(x, w1, precision=_HIGH) + b1, 0.0)
        return jnp.dot(h, w2, precision=_HIGH) + b2

    # --- perception branch ---
    perception = jax.random.normal(k_perc, (batch, perception_dim), jnp.float32)
    msg_logits = agent(perception=perception)
    jax.block_until_ready(msg_logits)
    assert msg_logits.shape == (batch, msg_dim)
    ref = mlp_ref(perception, pe_w, pe_b, mc_w, mc_b)
    assert jnp.allclose(msg_logits, ref, atol=1e-5, rtol=1e-5)

    # --- perception branch, batch not a multiple of 8 (exercises pad path) ---
    perception2 = jax.random.normal(k_perc2, (13, perception_dim), jnp.float32)
    msg_logits2 = agent(perception=perception2)
    jax.block_until_ready(msg_logits2)
    assert msg_logits2.shape == (13, msg_dim)
    ref2 = mlp_ref(perception2, pe_w, pe_b, mc_w, mc_b)
    assert jnp.allclose(msg_logits2, ref2, atol=1e-5, rtol=1e-5)

    # --- message branch (float message) ---
    msg_f = jax.random.normal(k_msg, (batch, msg_dim), jnp.float32)
    color_logits = agent(msg=msg_f)
    jax.block_until_ready(color_logits)
    assert color_logits.shape == (batch, color_dim)
    ref = mlp_ref(msg_f, mr_w, mr_b, ce_w, ce_b)
    assert jnp.allclose(color_logits, ref, atol=1e-5, rtol=1e-5)

    # --- message branch (LongTensor / integer index path) ---
    msg_idx = jax.random.randint(k_idx, (batch,), 0, msg_dim)
    color_logits_idx = agent(msg=msg_idx)
    jax.block_until_ready(color_logits_idx)
    assert color_logits_idx.shape == (batch, color_dim)
    onehot = jax.nn.one_hot(msg_idx, msg_dim, dtype=jnp.float32)
    ref = mlp_ref(onehot, mr_w, mr_b, ce_w, ce_b)
    assert jnp.allclose(color_logits_idx, ref, atol=1e-5, rtol=1e-5)

    print("KERNEL_OK")
</pallas_src>

<mosaic_0001>
module attributes {stable_mosaic.version = 11 : i64} {
  func.func @_fused_mlp_kernel(%arg0: i32, %arg1: memref<8x3xf32, #tpu.memory_space<vmem>>, %arg2: memref<3x128xf32, #tpu.memory_space<vmem>>, %arg3: memref<1x128xf32, #tpu.memory_space<vmem>>, %arg4: memref<128x128xf32, #tpu.memory_space<vmem>>, %arg5: memref<1x128xf32, #tpu.memory_space<vmem>>, %arg6: memref<8x128xf32, #tpu.memory_space<vmem>>) attributes {dimension_semantics = [#tpu.dimension_semantics<parallel>], iteration_bounds = array<i64: 1>, scalar_prefetch = 0 : i64, scratch_operands = 0 : i64, tpu.core_type = #tpu.core_type<tc>, window_params = [{transform_indices = @transform_0, window_bounds = array<i64: 8, 3>}, {pipeline_mode = #tpu.pipeline_mode<synchronous>, transform_indices = @transform_1, window_bounds = array<i64: 3, 128>}, {pipeline_mode = #tpu.pipeline_mode<synchronous>, transform_indices = @transform_2, window_bounds = array<i64: 1, 128>}, {pipeline_mode = #tpu.pipeline_mode<synchronous>, transform_indices = @transform_3, window_bounds = array<i64: 128, 128>}, {pipeline_mode = #tpu.pipeline_mode<synchronous>, transform_indices = @transform_4, window_bounds = array<i64: 1, 128>}, {transform_indices = @transform_5, window_bounds = array<i64: 8, 128>}]} {
    %c0 = arith.constant 0 : index
    %c0_0 = arith.constant 0 : index
    %0 = vector.load %arg1[%c0, %c0_0] : memref<8x3xf32, #tpu.memory_space<vmem>>, vector<8x3xf32>
    %c0_1 = arith.constant 0 : index
    %c0_2 = arith.constant 0 : index
    %1 = vector.load %arg2[%c0_1, %c0_2] : memref<3x128xf32, #tpu.memory_space<vmem>>, vector<3x128xf32>
    %cst = arith.constant dense<0.000000e+00> : vector<8x128xf32>
    %2 = tpu.matmul %0, %1, %cst {dimension_numbers = #tpu.dot_dimension_numbers<[1], [0], [0], [1], [0, 0, 1, 1], [], []>, precision = #tpu.contract_precision<fp32>} : vector<8x3xf32>, vector<3x128xf32>, vector<8x128xf32> -> vector<8x128xf32>
    %c0_3 = arith.constant 0 : index
    %c0_4 = arith.constant 0 : index
    %3 = vector.load %arg3[%c0_3, %c0_4] : memref<1x128xf32, #tpu.memory_space<vmem>>, vector<1x128xf32>
    %4 = vector.broadcast %3 : vector<1x128xf32> to vector<8x128xf32>
    %5 = arith.addf %2, %4 : vector<8x128xf32>
    %cst_5 = arith.constant 0.000000e+00 : f32
    %6 = vector.broadcast %cst_5 : f32 to vector<8x128xf32>
    %7 = arith.maximumf %5, %6 : vector<8x128xf32>
    %c0_6 = arith.constant 0 : index
    %c0_7 = arith.constant 0 : index
    %8 = vector.load %arg4[%c0_6, %c0_7] : memref<128x128xf32, #tpu.memory_space<vmem>>, vector<128x128xf32>
    %cst_8 = arith.constant dense<0.000000e+00> : vector<8x128xf32>
    %9 = tpu.matmul %7, %8, %cst_8 {dimension_numbers = #tpu.dot_dimension_numbers<[1], [0], [0], [1], [0, 0, 1, 1], [], []>, precision = #tpu.contract_precision<fp32>} : vector<8x128xf32>, vector<128x128xf32>, vector<8x128xf32> -> vector<8x128xf32>
    %c0_9 = arith.constant 0 : index
    %c0_10 = arith.constant 0 : index
    %10 = vector.load %arg5[%c0_9, %c0_10] : memref<1x128xf32, #tpu.memory_space<vmem>>, vector<1x128xf32>
    %11 = vector.broadcast %10 : vector<1x128xf32> to vector<8x128xf32>
    %12 = arith.addf %9, %11 : vector<8x128xf32>
    %c0_11 = arith.constant 0 : index
    %c0_12 = arith.constant 0 : index
    %13 = vector.load %arg6[%c0_11, %c0_12] : memref<8x128xf32, #tpu.memory_space<vmem>>, vector<8x128xf32>
    tpu.vector_store %arg6[%c0_11, %c0_12], %12 {strides = array<i32>} : memref<8x128xf32, #tpu.memory_space<vmem>>, vector<8x128xf32>,
    return
  }
  func.func @transform_0(%arg0: i32) -> (i32, i32) {
    %c0_i32 = arith.constant 0 : i32
    %c0_i32_0 = arith.constant 0 : i32
    return %arg0, %c0_i32 : i32, i32
  }
  func.func @transform_1(%arg0: i32) -> (i32, i32) {
    %c0_i32 = arith.constant 0 : i32
    %c0_i32_0 = arith.constant 0 : i32
    %c0_i32_1 = arith.constant 0 : i32
    return %c0_i32, %c0_i32_0 : i32, i32
  }
  func.func @transform_2(%arg0: i32) -> (i32, i32) {
    %c0_i32 = arith.constant 0 : i32
    %c0_i32_0 = arith.constant 0 : i32
    %c0_i32_1 = arith.constant 0 : i32
    return %c0_i32, %c0_i32_0 : i32, i32
  }
  func.func @transform_3(%arg0: i32) -> (i32, i32) {
    %c0_i32 = arith.constant 0 : i32
    %c0_i32_0 = arith.constant 0 : i32
    %c0_i32_1 = arith.constant 0 : i32
    return %c0_i32, %c0_i32_0 : i32, i32
  }
  func.func @transform_4(%arg0: i32) -> (i32, i32) {
    %c0_i32 = arith.constant 0 : i32
    %c0_i32_0 = arith.constant 0 : i32
    %c0_i32_1 = arith.constant 0 : i32
    return %c0_i32, %c0_i32_0 : i32, i32
  }
  func.func @transform_5(%arg0: i32) -> (i32, i32) {
    %c0_i32 = arith.constant 0 : i32
    %c0_i32_0 = arith.constant 0 : i32
    return %arg0, %c0_i32 : i32, i32
  }
}

</mosaic_0001>

<llo_original>
// kernel: fused_linear_relu_linear.1
$region0: #{fused_linear_relu_linear.1}
  #allocation0 [shape = 'u32[]', space=smem, size = 0x4, offset = 0x4, fixed_abs, tag = 'smem constant byte address 0x4 - core index']
  #allocation1 [shape = 'u32[144,128]{1,0:T(1,128)}', space=vmem, size = 0x12000, scoped, tag = 'internal scratch']
  %s0 = inlined_call_operand.vmem [shape: f32[8,3], index: 0, kind: input, shape index: {}]
  %s1 = inlined_call_operand.vmem [shape: f32[3,128], index: 1, kind: input, shape index: {}]
  %s2 = inlined_call_operand.vmem [shape: f32[1,128], index: 2, kind: input, shape index: {}]
  %s3 = inlined_call_operand.hbm [shape: f32[128,128], index: 3, kind: input, shape index: {}]
  %s4 = inlined_call_operand.vmem [shape: f32[1,128], index: 4, kind: input, shape index: {}]
  %s5 = inlined_call_operand.hbm [shape: f32[8,128], index: 5, kind: output, shape index: {}]
  %s6 = sld [smem:[#allocation0]]
  $region34: #{fused_linear_relu_linear.1} parent=0
    _
  %s8 = ssub.s32 1, %s6
  %s9 = scalar_select 0, %s8, %s6
  $region1: #{fused_linear_relu_linear.1} parent=0
    #allocation2 [shape = 'u8[65536]{0}', space=vmem, size = 0x10000, scoped, tag = 'input window, operand 3, single buffered']
    #allocation3 [shape = 's32[1]{0}', space=sflag, size = 0x4, scoped, tag = 'scoped memory for fused_linear_relu_linear.1']
    #allocation4 [shape = 's32[1]{0}', space=sflag, size = 0x4, scoped, tag = 'scoped memory for fused_linear_relu_linear.1']
    #allocation5 [shape = 'u8[4096]{0}', space=vmem, size = 0x1000, scoped, tag = 'output window, operand 0, single buffered']
    %10 = vsyncpa [#allocation3], 0
    %11 = vsyncpa [#allocation4], 0
    // Predicated region
    $region2: #{fused_linear_relu_linear.1} parent=1 // pred_check
      _
    $region3: #{fused_linear_relu_linear.1} parent=1 // pred_check_branch
      %13 = sbr.rel (0) target = $region5
    $region4: #{fused_linear_relu_linear.1} parent=1 // pred_region
      _
    $region5: #{fused_linear_relu_linear.1} parent=1 // pred_fallthru
      _
    // Predicated region
    $region6: #{fused_linear_relu_linear.1} parent=1 // pred_check
      _
    $region7: #{fused_linear_relu_linear.1} parent=1 // pred_check_branch
      %15 = sbr.rel (0) target = $region9
    $region8: #{fused_linear_relu_linear.1} parent=1 // pred_region
      _
    $region9: #{fused_linear_relu_linear.1} parent=1 // pred_fallthru
      _
    // Predicated region
    $region10: #{fused_linear_relu_linear.1} parent=1 // pred_check
      _
    $region11: #{fused_linear_relu_linear.1} parent=1 // pred_check_branch
      %17 = sbr.rel (0) target = $region13
    $region12: #{fused_linear_relu_linear.1} parent=1 // pred_region
      _
    $region13: #{fused_linear_relu_linear.1} parent=1 // pred_fallthru
      _
    // Predicated region
    $region14: #{fused_linear_relu_linear.1} parent=1 // pred_check
      _
    $region15: #{fused_linear_relu_linear.1} parent=1 // pred_check_branch
      %19 = sbr.rel (0) target = $region17
    $region16: #{fused_linear_relu_linear.1} parent=1 // pred_region
      %s21 = ssub.s32 2048, 2048
      %22 = vsyncadd [#allocation3], %s21
      %s23 = sshll.u32 [#allocation2], 4
      %s24 = int_to_ptr.vmem [resolvable:$true] %s23
      %29 = dma.hbm_to_vmem [thread:$0]  %s3, 2048, %s24, [#allocation3], 128, 128, 8
    $region17: #{fused_linear_relu_linear.1} parent=1 // pred_fallthru
      _
    // Predicated region
    $region18: #{fused_linear_relu_linear.1} parent=1 // pred_check
      _
    $region19: #{fused_linear_relu_linear.1} parent=1 // pred_check_branch
      %31 = sbr.rel (0) target = $region21
    $region20: #{fused_linear_relu_linear.1} parent=1 // pred_region
      _
    $region21: #{fused_linear_relu_linear.1} parent=1 // pred_fallthru
      _
    // Predicated region
    $region22: #{fused_linear_relu_linear.1} parent=1 // pred_check
      _
    $region23: #{fused_linear_relu_linear.1} parent=1 // pred_check_branch
      %33 = sbr.rel (0) target = $region25
    $region24: #{fused_linear_relu_linear.1} parent=1 // pred_region
      %34 = dma.done [#allocation3], 2048
    $region25: #{fused_linear_relu_linear.1} parent=1 // pred_fallthru
      _
    %v35 = vld [vmem:[%s0] sm:$0xff]
    %v36 = vld [vmem:[%s1] sm:$0x7]
    %v37 = vld [vmem:[%s2] sm:$0x1]
    %v39 = vlaneseq
    %v40 = vshrl.u32 %v39, 7
    %v41 = vsub.s32 0, %v40
    %v42 = vrot.slane %v37, %v41
    %vm44 = vcmask 23552
    %v46 = vsel %vm44, %v35, 0
    %vm48 = vcmask 1042432
    %v50 = vsel %vm48, %v36, 0
    %52 = vmatprep.subr.mxu0 0.0
    %v53 = vand.u32 %v50, 4294901760
    %54 = vmatpush1.msra.mxu0 %v53
    %55 = vmatprep.subr.mxu0 0.0
    %56 = vmatpush1.msra.mxu0 0.0
    %57 = vmatprep.subr.mxu0 0.0
    %58 = vmatpush1.msra.mxu0 0.0
    %59 = vmatprep.subr.mxu0 0.0
    %60 = vmatpush1.msra.mxu0 0.0
    %61 = vmatprep.subr.mxu0 0.0
    %62 = vmatpush1.msra.mxu0 0.0
    %63 = vmatprep.subr.mxu0 0.0
    %64 = vmatpush1.msra.mxu0 0.0
    %65 = vmatprep.subr.mxu0 0.0
    %66 = vmatpush1.msra.mxu0 0.0
    %67 = vmatprep.subr.mxu0 0.0
    %68 = vmatpush1.msra.mxu0 0.0
    %69 = vmatprep.subr.mxu0 0.0
    %70 = vmatpush1.msra.mxu0 0.0
    %71 = vmatprep.subr.mxu0 0.0
    %72 = vmatpush1.msra.mxu0 0.0
    %73 = vmatprep.subr.mxu0 0.0
    %74 = vmatpush1.msra.mxu0 0.0
    %75 = vmatprep.subr.mxu0 0.0
    %76 = vmatpush1.msra.mxu0 0.0
    %77 = vmatprep.subr.mxu0 0.0
    %78 = vmatpush1.msra.mxu0 0.0
    %79 = vmatprep.subr.mxu0 0.0
    %80 = vmatpush1.msra.mxu0 0.0
    %81 = vmatprep.subr.mxu0 0.0
    %82 = vmatpush1.msra.mxu0 0.0
    %83 = vmatprep.subr.mxu0 0.0
    %84 = vmatpush1.msra.mxu0 0.0
    %85 = vmatprep.subr.mxu0 0.0
    %86 = vmatpush1.msra.mxu0 0.0
    %87 = vmatprep.subr.mxu0 0.0
    %88 = vmatpush1.msra.mxu0 0.0
    %89 = vmatprep.subr.mxu0 0.0
    %90 = vmatpush1.msra.mxu0 0.0
    %91 = vmatprep.subr.mxu0 0.0
    %92 = vmatpush1.msra.mxu0 0.0
    %93 = vmatprep.subr.mxu0 0.0
    %94 = vmatpush1.msra.mxu0 0.0
    %95 = vmatprep.subr.mxu0 0.0
    %96 = vmatpush1.msra.mxu0 0.0
    %97 = vmatprep.subr.mxu0 0.0
    %98 = vmatpush1.msra.mxu0 0.0
    %99 = vmatprep.subr.mxu0 0.0
    %100 = vmatpush1.msra.mxu0 0.0
    %101 = vmatprep.subr.mxu0 0.0
    %102 = vmatpush1.msra.mxu0 0.0
    %103 = vmatprep.subr.mxu0 0.0
    %104 = vmatpush1.msra.mxu0 0.0
    %105 = vmatprep.subr.mxu0 0.0
    %106 = vmatpush1.msra.mxu0 0.0
    %107 = vmatprep.subr.mxu0 0.0
    %108 = vmatpush1.msra.mxu0 0.0
    %109 = vmatprep.subr.mxu0 0.0
    %110 = vmatpush1.msra.mxu0 0.0
    %111 = vmatprep.subr.mxu0 0.0
    %112 = vmatpush1.msra.mxu0 0.0
    %113 = vmatprep.subr.mxu0 0.0
    %114 = vmatpush1.msra.mxu0 0.0
    %115 = vmatprep.subr.mxu0 0.0
    %116 = vmatpush1.msra.mxu0 0.0
    %117 = vmatprep.mubr.f32.mxu0 0.0
    %v118 = vand.u32 %v46, 4294901760
    %v119 = vsub.f32 %v46, %v118
    %v120 = vand.u32 %v119, 4294901760
    %v121 = vsub.f32 %v119, %v120
    %v122 = vand.u32 %v121, 4294901760
    %123 = vmatmul.mubr.f32.gmra.mrb[0].mxu0 %v122
    %v124 = vpop.f32.mrb[0].mxu0
    %v125 = vadd.f32 %v42, %v124
    %v126 = vpop.f32.mrb[0].mxu0
    %127 = vdwg.mxu0
    %128 = vmatprep.subr.mxu0 0.0
    %v129 = vand.u32 %v50, 4294901760
    %v130 = vsub.f32 %v50, %v129
    %v131 = vand.u32 %v130, 4294901760
    %v132 = vsub.f32 %v130, %v131
    %v133 = vand.u32 %v132, 4294901760
    %134 = vmatpush1.msra.mxu0 %v133
    %135 = vmatprep.subr.mxu0 0.0
    %136 = vmatpush1.msra.mxu0 0.0
    %137 = vmatprep.subr.mxu0 0.0
    %138 = vmatpush1.msra.mxu0 0.0
    %139 = vmatprep.subr.mxu0 0.0
    %140 = vmatpush1.msra.mxu0 0.0
    %141 = vmatprep.subr.mxu0 0.0
    %142 = vmatpush1.msra.mxu0 0.0
    %143 = vmatprep.subr.mxu0 0.0
    %144 = vmatpush1.msra.mxu0 0.0
    %145 = vmatprep.subr.mxu0 0.0
    %146 = vmatpush1.msra.mxu0 0.0
    %147 = vmatprep.subr.mxu0 0.0
    %148 = vmatpush1.msra.mxu0 0.0
    %149 = vmatprep.subr.mxu0 0.0
    %150 = vmatpush1.msra.mxu0 0.0
    %151 = vmatprep.subr.mxu0 0.0
    %152 = vmatpush1.msra.mxu0 0.0
    %153 = vmatprep.subr.mxu0 0.0
    %154 = vmatpush1.msra.mxu0 0.0
    %155 = vmatprep.subr.mxu0 0.0
    %156 = vmatpush1.msra.mxu0 0.0
    %157 = vmatprep.subr.mxu0 0.0
    %158 = vmatpush1.msra.mxu0 0.0
    %159 = vmatprep.subr.mxu0 0.0
    %160 = vmatpush1.msra.mxu0 0.0
    %161 = vmatprep.subr.mxu0 0.0
    %162 = vmatpush1.msra.mxu0 0.0
    %163 = vmatprep.subr.mxu0 0.0
    %164 = vmatpush1.msra.mxu0 0.0
    %165 = vmatprep.subr.mxu0 0.0
    %166 = vmatpush1.msra.mxu0 0.0
    %167 = vmatprep.subr.mxu0 0.0
    %168 = vmatpush1.msra.mxu0 0.0
    %169 = vmatprep.subr.mxu0 0.0
    %170 = vmatpush1.msra.mxu0 0.0
    %171 = vmatprep.subr.mxu0 0.0
    %172 = vmatpush1.msra.mxu0 0.0
    %173 = vmatprep.subr.mxu0 0.0
    %174 = vmatpush1.msra.mxu0 0.0
    %175 = vmatprep.subr.mxu0 0.0
    %176 = vmatpush1.msra.mxu0 0.0
    %177 = vmatprep.subr.mxu0 0.0
    %178 = vmatpush1.msra.mxu0 0.0
    %179 = vmatprep.subr.mxu0 0.0
    %180 = vmatpush1.msra.mxu0 0.0
    %181 = vmatprep.subr.mxu0 0.0
    %182 = vmatpush1.msra.mxu0 0.0
    %183 = vmatprep.subr.mxu0 0.0
    %184 = vmatpush1.msra.mxu0 0.0
    %185 = vmatprep.subr.mxu0 0.0
    %186 = vmatpush1.msra.mxu0 0.0
    %187 = vmatprep.subr.mxu0 0.0
    %188 = vmatpush1.msra.mxu0 0.0
    %189 = vmatprep.subr.mxu0 0.0
    %190 = vmatpush1.msra.mxu0 0.0
    %191 = vmatprep.subr.mxu0 0.0
    %192 = vmatpush1.msra.mxu0 0.0
    %193 = vmatprep.subr.mxu0 0.0
    %194 = vmatpush1.msra.mxu0 0.0
    %195 = vmatprep.subr.mxu0 0.0
    %196 = vmatpush1.msra.mxu0 0.0
    %197 = vmatprep.mubr.f32.mxu0 0.0
    %v198 = vand.u32 %v46, 4294901760
    %199 = vmatmul.mubr.f32.gmra.mrb[0].mxu0 %v198
    %v200 = vpop.f32.mrb[0].mxu0
    %v201 = vadd.f32 %v125, %v200
    %v202 = vpop.f32.mrb[0].mxu0
    %203 = vdwg.mxu0
    %204 = vmatprep.subr.mxu0 0.0
    %v205 = vand.u32 %v50, 4294901760
    %v206 = vsub.f32 %v50, %v205
    %207 = vmatpush1.msra.mxu0 %v206
    %208 = vmatprep.subr.mxu0 0.0
    %209 = vmatpush1.msra.mxu0 0.0
    %210 = vmatprep.subr.mxu0 0.0
    %211 = vmatpush1.msra.mxu0 0.0
    %212 = vmatprep.subr.mxu0 0.0
    %213 = vmatpush1.msra.mxu0 0.0
    %214 = vmatprep.subr.mxu0 0.0
    %215 = vmatpush1.msra.mxu0 0.0
    %216 = vmatprep.subr.mxu0 0.0
    %217 = vmatpush1.msra.mxu0 0.0
    %218 = vmatprep.subr.mxu0 0.0
    %219 = vmatpush1.msra.mxu0 0.0
    %220 = vmatprep.subr.mxu0 0.0
    %221 = vmatpush1.msra.mxu0 0.0
    %222 = vmatprep.subr.mxu0 0.0
    %223 = vmatpush1.msra.mxu0 0.0
    %224 = vmatprep.subr.mxu0 0.0
    %225 = vmatpush1.msra.mxu0 0.0
    %226 = vmatprep.subr.mxu0 0.0
    %227 = vmatpush1.msra.mxu0 0.0
    %228 = vmatprep.subr.mxu0 0.0
    %229 = vmatpush1.msra.mxu0 0.0
    %230 = vmatprep.subr.mxu0 0.0
    %231 = vmatpush1.msra.mxu0 0.0
    %232 = vmatprep.subr.mxu0 0.0
    %233 = vmatpush1.msra.mxu0 0.0
    %234 = vmatprep.subr.mxu0 0.0
    %235 = vmatpush1.msra.mxu0 0.0
    %236 = vmatprep.subr.mxu0 0.0
    %237 = vmatpush1.msra.mxu0 0.0
    %238 = vmatprep.subr.mxu0 0.0
    %239 = vmatpush1.msra.mxu0 0.0
    %240 = vmatprep.subr.mxu0 0.0
    %241 = vmatpush1.msra.mxu0 0.0
    %242 = vmatprep.subr.mxu0 0.0
    %243 = vmatpush1.msra.mxu0 0.0
    %244 = vmatprep.subr.mxu0 0.0
    %245 = vmatpush1.msra.mxu0 0.0
    %246 = vmatprep.subr.mxu0 0.0
    %247 = vmatpush1.msra.mxu0 0.0
    %248 = vmatprep.subr.mxu0 0.0
    %249 = vmatpush1.msra.mxu0 0.0
    %250 = vmatprep.subr.mxu0 0.0
    %251 = vmatpush1.msra.mxu0 0.0
    %252 = vmatprep.subr.mxu0 0.0
    %253 = vmatpush1.msra.mxu0 0.0
    %254 = vmatprep.subr.mxu0 0.0
    %255 = vmatpush1.msra.mxu0 0.0
    %256 = vmatprep.subr.mxu0 0.0
    %257 = vmatpush1.msra.mxu0 0.0
    %258 = vmatprep.subr.mxu0 0.0
    %259 = vmatpush1.msra.mxu0 0.0
    %260 = vmatprep.subr.mxu0 0.0
    %261 = vmatpush1.msra.mxu0 0.0
    %262 = vmatprep.subr.mxu0 0.0
    %263 = vmatpush1.msra.mxu0 0.0
    %264 = vmatprep.subr.mxu0 0.0
    %265 = vmatpush1.msra.mxu0 0.0
    %266 = vmatprep.subr.mxu0 0.0
    %267 = vmatpush1.msra.mxu0 0.0
    %268 = vmatprep.subr.mxu0 0.0
    %269 = vmatpush1.msra.mxu0 0.0
    %270 = vmatprep.mubr.f32.mxu0 0.0
    %v271 = vand.u32 %v46, 4294901760
    %v272 = vsub.f32 %v46, %v271
    %273 = vmatmul.mubr.f32.gmra.mrb[0].mxu0 %v272
    %v274 = vpop.f32.mrb[0].mxu0
    %v275 = vadd.f32 %v201, %v274
    %v276 = vpop.f32.mrb[0].mxu0
    %277 = vdwg.mxu0
    %278 = vmatprep.subr.mxu0 0.0
    %v279 = vand.u32 %v50, 4294901760
    %280 = vmatpush1.msra.mxu0 %v279
    %281 = vmatprep.subr.mxu0 0.0
    %282 = vmatpush1.msra.mxu0 0.0
    %283 = vmatprep.subr.mxu0 0.0
    %284 = vmatpush1.msra.mxu0 0.0
    %285 = vmatprep.subr.mxu0 0.0
    %286 = vmatpush1.msra.mxu0 0.0
    %287 = vmatprep.subr.mxu0 0.0
    %288 = vmatpush1.msra.mxu0 0.0
    %289 = vmatprep.subr.mxu0 0.0
    %290 = vmatpush1.msra.mxu0 0.0
    %291 = vmatprep.subr.mxu0 0.0
    %292 = vmatpush1.msra.mxu0 0.0
    %293 = vmatprep.subr.mxu0 0.0
    %294 = vmatpush1.msra.mxu0 0.0
    %295 = vmatprep.subr.mxu0 0.0
    %296 = vmatpush1.msra.mxu0 0.0
    %297 = vmatprep.subr.mxu0 0.0
    %298 = vmatpush1.msra.mxu0 0.0
    %299 = vmatprep.subr.mxu0 0.0
    %300 = vmatpush1.msra.mxu0 0.0
    %301 = vmatprep.subr.mxu0 0.0
    %302 = vmatpush1.msra.mxu0 0.0
    %303 = vmatprep.subr.mxu0 0.0
    %304 = vmatpush1.msra.mxu0 0.0
    %305 = vmatprep.subr.mxu0 0.0
    %306 = vmatpush1.msra.mxu0 0.0
    %307 = vmatprep.subr.mxu0 0.0
    %308 = vmatpush1.msra.mxu0 0.0
    %309 = vmatprep.subr.mxu0 0.0
    %310 = vmatpush1.msra.mxu0 0.0
    %311 = vmatprep.subr.mxu0 0.0
    %312 = vmatpush1.msra.mxu0 0.0
    %313 = vmatprep.subr.mxu0 0.0
    %314 = vmatpush1.msra.mxu0 0.0
    %315 = vmatprep.subr.mxu0 0.0
    %316 = vmatpush1.msra.mxu0 0.0
    %317 = vmatprep.subr.mxu0 0.0
    %318 = vmatpush1.msra.mxu0 0.0
    %319 = vmatprep.subr.mxu0 0.0
    %320 = vmatpush1.msra.mxu0 0.0
    %321 = vmatprep.subr.mxu0 0.0
    %322 = vmatpush1.msra.mxu0 0.0
    %323 = vmatprep.subr.mxu0 0.0
    %324 = vmatpush1.msra.mxu0 0.0
    %325 = vmatprep.subr.mxu0 0.0
    %326 = vmatpush1.msra.mxu0 0.0
    %327 = vmatprep.subr.mxu0 0.0
    %328 = vmatpush1.msra.mxu0 0.0
    %329 = vmatprep.subr.mxu0 0.0
    %330 = vmatpush1.msra.mxu0 0.0
    %331 = vmatprep.subr.mxu0 0.0
    %332 = vmatpush1.msra.mxu0 0.0
    %333 = vmatprep.subr.mxu0 0.0
    %334 = vmatpush1.msra.mxu0 0.0
    %335 = vmatprep.subr.mxu0 0.0
    %336 = vmatpush1.msra.mxu0 0.0
    %337 = vmatprep.subr.mxu0 0.0
    %338 = vmatpush1.msra.mxu0 0.0
    %339 = vmatprep.subr.mxu0 0.0
    %340 = vmatpush1.msra.mxu0 0.0
    %341 = vmatprep.subr.mxu0 0.0
    %342 = vmatpush1.msra.mxu0 0.0
    %343 = vmatprep.mubr.f32.mxu0 0.0
    %v344 = vand.u32 %v46, 4294901760
    %v345 = vsub.f32 %v46, %v344
    %v346 = vand.u32 %v345, 4294901760
    %347 = vmatmul.mubr.f32.gmra.mrb[0].mxu0 %v346
    %v348 = vpop.f32.mrb[0].mxu0
    %v349 = vadd.f32 %v275, %v348
    %v350 = vpop.f32.mrb[0].mxu0
    %351 = vdwg.mxu0
    %352 = vmatprep.subr.mxu0 0.0
    %v353 = vand.u32 %v50, 4294901760
    %v354 = vsub.f32 %v50, %v353
    %v355 = vand.u32 %v354, 4294901760
    %356 = vmatpush1.msra.mxu0 %v355
    %357 = vmatprep.subr.mxu0 0.0
    %358 = vmatpush1.msra.mxu0 0.0
    %359 = vmatprep.subr.mxu0 0.0
    %360 = vmatpush1.msra.mxu0 0.0
    %361 = vmatprep.subr.mxu0 0.0
    %362 = vmatpush1.msra.mxu0 0.0
    %363 = vmatprep.subr.mxu0 0.0
    %364 = vmatpush1.msra.mxu0 0.0
    %365 = vmatprep.subr.mxu0 0.0
    %366 = vmatpush1.msra.mxu0 0.0
    %367 = vmatprep.subr.mxu0 0.0
    %368 = vmatpush1.msra.mxu0 0.0
    %369 = vmatprep.subr.mxu0 0.0
    %370 = vmatpush1.msra.mxu0 0.0
    %371 = vmatprep.subr.mxu0 0.0
    %372 = vmatpush1.msra.mxu0 0.0
    %373 = vmatprep.subr.mxu0 0.0
    %374 = vmatpush1.msra.mxu0 0.0
    %375 = vmatprep.subr.mxu0 0.0
    %376 = vmatpush1.msra.mxu0 0.0
    %377 = vmatprep.subr.mxu0 0.0
    %378 = vmatpush1.msra.mxu0 0.0
    %379 = vmatprep.subr.mxu0 0.0
    %380 = vmatpush1.msra.mxu0 0.0
    %381 = vmatprep.subr.mxu0 0.0
    %382 = vmatpush1.msra.mxu0 0.0
    %383 = vmatprep.subr.mxu0 0.0
    %384 = vmatpush1.msra.mxu0 0.0
    %385 = vmatprep.subr.mxu0 0.0
    %386 = vmatpush1.msra.mxu0 0.0
    %387 = vmatprep.subr.mxu0 0.0
    %388 = vmatpush1.msra.mxu0 0.0
    %389 = vmatprep.subr.mxu0 0.0
    %390 = vmatpush1.msra.mxu0 0.0
    %391 = vmatprep.subr.mxu0 0.0
    %392 = vmatpush1.msra.mxu0 0.0
    %393 = vmatprep.subr.mxu0 0.0
    %394 = vmatpush1.msra.mxu0 0.0
    %395 = vmatprep.subr.mxu0 0.0
    %396 = vmatpush1.msra.mxu0 0.0
    %397 = vmatprep.subr.mxu0 0.0
    %398 = vmatpush1.msra.mxu0 0.0
    %399 = vmatprep.subr.mxu0 0.0
    %400 = vmatpush1.msra.mxu0 0.0
    %401 = vmatprep.subr.mxu0 0.0
    %402 = vmatpush1.msra.mxu0 0.0
    %403 = vmatprep.subr.mxu0 0.0
    %404 = vmatpush1.msra.mxu0 0.0
    %405 = vmatprep.subr.mxu0 0.0
    %406 = vmatpush1.msra.mxu0 0.0
    %407 = vmatprep.subr.mxu0 0.0
    %408 = vmatpush1.msra.mxu0 0.0
    %409 = vmatprep.subr.mxu0 0.0
    %410 = vmatpush1.msra.mxu0 0.0
    %411 = vmatprep.subr.mxu0 0.0
    %412 = vmatpush1.msra.mxu0 0.0
    %413 = vmatprep.subr.mxu0 0.0
    %414 = vmatpush1.msra.mxu0 0.0
    %415 = vmatprep.subr.mxu0 0.0
    %416 = vmatpush1.msra.mxu0 0.0
    %417 = vmatprep.subr.mxu0 0.0
    %418 = vmatpush1.msra.mxu0 0.0
    %419 = vmatprep.mubr.f32.mxu0 0.0
    %v420 = vand.u32 %v46, 4294901760
    %421 = vmatmul.mubr.f32.gmra.mrb[0].mxu0 %v420
    %v422 = vpop.f32.mrb[0].mxu0
    %v423 = vadd.f32 %v349, %v422
    %v424 = vpop.f32.mrb[0].mxu0
    %425 = vdwg.mxu0
    %426 = vmatprep.subr.mxu0 0.0
    %v427 = vand.u32 %v50, 4294901760
    %428 = vmatpush1.msra.mxu0 %v427
    %429 = vmatprep.subr.mxu0 0.0
    %430 = vmatpush1.msra.mxu0 0.0
    %431 = vmatprep.subr.mxu0 0.0
    %432 = vmatpush1.msra.mxu0 0.0
    %433 = vmatprep.subr.mxu0 0.0
    %434 = vmatpush1.msra.mxu0 0.0
    %435 = vmatprep.subr.mxu0 0.0
    %436 = vmatpush1.msra.mxu0 0.0
    %437 = vmatprep.subr.mxu0 0.0
    %438 = vmatpush1.msra.mxu0 0.0
    %439 = vmatprep.subr.mxu0 0.0
    %440 = vmatpush1.msra.mxu0 0.0
    %441 = vmatprep.subr.mxu0 0.0
    %442 = vmatpush1.msra.mxu0 0.0
    %443 = vmatprep.subr.mxu0 0.0
    %444 = vmatpush1.msra.mxu0 0.0
    %445 = vmatprep.subr.mxu0 0.0
    %446 = vmatpush1.msra.mxu0 0.0
    %447 = vmatprep.subr.mxu0 0.0
    %448 = vmatpush1.msra.mxu0 0.0
    %449 = vmatprep.subr.mxu0 0.0
    %450 = vmatpush1.msra.mxu0 0.0
    %451 = vmatprep.subr.mxu0 0.0
    %452 = vmatpush1.msra.mxu0 0.0
    %453 = vmatprep.subr.mxu0 0.0
    %454 = vmatpush1.msra.mxu0 0.0
    %455 = vmatprep.subr.mxu0 0.0
    %456 = vmatpush1.msra.mxu0 0.0
    %457 = vmatprep.subr.mxu0 0.0
    %458 = vmatpush1.msra.mxu0 0.0
    %459 = vmatprep.subr.mxu0 0.0
    %460 = vmatpush1.msra.mxu0 0.0
    %461 = vmatprep.subr.mxu0 0.0
    %462 = vmatpush1.msra.mxu0 0.0
    %463 = vmatprep.subr.mxu0 0.0
    %464 = vmatpush1.msra.mxu0 0.0
    %465 = vmatprep.subr.mxu0 0.0
    %466 = vmatpush1.msra.mxu0 0.0
    %467 = vmatprep.subr.mxu0 0.0
    %468 = vmatpush1.msra.mxu0 0.0
    %469 = vmatprep.subr.mxu0 0.0
    %470 = vmatpush1.msra.mxu0 0.0
    %471 = vmatprep.subr.mxu0 0.0
    %472 = vmatpush1.msra.mxu0 0.0
    %473 = vmatprep.subr.mxu0 0.0
    %474 = vmatpush1.msra.mxu0 0.0
    %475 = vmatprep.subr.mxu0 0.0
    %476 = vmatpush1.msra.mxu0 0.0
    %477 = vmatprep.subr.mxu0 0.0
    %478 = vmatpush1.msra.mxu0 0.0
    %479 = vmatprep.subr.mxu0 0.0
    %480 = vmatpush1.msra.mxu0 0.0
    %481 = vmatprep.subr.mxu0 0.0
    %482 = vmatpush1.msra.mxu0 0.0
    %483 = vmatprep.subr.mxu0 0.0
    %484 = vmatpush1.msra.mxu0 0.0
    %485 = vmatprep.subr.mxu0 0.0
    %486 = vmatpush1.msra.mxu0 0.0
    %487 = vmatprep.subr.mxu0 0.0
    %488 = vmatpush1.msra.mxu0 0.0
    %489 = vmatprep.subr.mxu0 0.0
    %490 = vmatpush1.msra.mxu0 0.0
    %491 = vmatprep.mubr.f32.mxu0 0.0
    %v492 = vand.u32 %v46, 4294901760
    %493 = vmatmul.mubr.f32.gmra.mrb[0].mxu0 %v492
    %v494 = vpop.f32.mrb[0].mxu0
    %v495 = vadd.f32 %v423, %v494
    %v496 = vpop.f32.mrb[0].mxu0
    %497 = vdwg.mxu0
    %v498 = vmax.f32 %v495, 0.0
    %v499 = vld [vmem:[#allocation2] sm:$0xff]
    %v500 = vld [vmem:[#allocation2 + $0x8] sm:$0xff]
    %v501 = vld [vmem:[#allocation2 + $0x10] sm:$0xff]
    %v502 = vld [vmem:[#allocation2 + $0x18] sm:$0xff]
    %v503 = vld [vmem:[#allocation2 + $0x20] sm:$0xff]
    %v504 = vld [vmem:[#allocation2 + $0x28] sm:$0xff]
    %v505 = vld [vmem:[#allocation2 + $0x30] sm:$0xff]
    %v506 = vld [vmem:[#allocation2 + $0x38] sm:$0xff]
    %v507 = vld [vmem:[#allocation2 + $0x40] sm:$0xff]
    %v508 = vld [vmem:[#allocation2 + $0x48] sm:$0xff]
    %v509 = vld [vmem:[#allocation2 + $0x50] sm:$0xff]
    %v510 = vld [vmem:[#allocation2 + $0x58] sm:$0xff]
    %v511 = vld [vmem:[#allocation2 + $0x60] sm:$0xff]
    %v512 = vld [vmem:[#allocation2 + $0x68] sm:$0xff]
    %v513 = vld [vmem:[#allocation2 + $0x70] sm:$0xff]
    %v514 = vld [vmem:[#allocation2 + $0x78] sm:$0xff]
    %v515 = vld [vmem:[%s4] sm:$0x1]
    %v517 = vlaneseq
    %v518 = vshrl.u32 %v517, 7
    %v519 = vsub.s32 0, %v518
    %v520 = vrot.slane %v515, %v519
    %522 = vmatprep.subr.mxu0 0.0
    %v523 = vand.u32 %v499, 4294901760
    %524 = vmatpush1.msra.mxu0 %v523
    %525 = vmatprep.subr.mxu0 0.0
    %v526 = vand.u32 %v500, 4294901760
    %527 = vmatpush1.msra.mxu0 %v526
    %528 = vmatprep.subr.mxu0 0.0
    %v529 = vand.u32 %v501, 4294901760
    %530 = vmatpush1.msra.mxu0 %v529
    %531 = vmatprep.subr.mxu0 0.0
    %v532 = vand.u32 %v502, 4294901760
    %533 = vmatpush1.msra.mxu0 %v532
    %534 = vmatprep.subr.mxu0 0.0
    %v535 = vand.u32 %v503, 4294901760
    %536 = vmatpush1.msra.mxu0 %v535
    %537 = vmatprep.subr.mxu0 0.0
    %v538 = vand.u32 %v504, 4294901760
    %539 = vmatpush1.msra.mxu0 %v538
    %540 = vmatprep.subr.mxu0 0.0
    %v541 = vand.u32 %v505, 4294901760
    %542 = vmatpush1.msra.mxu0 %v541
    %543 = vmatprep.subr.mxu0 0.0
    %v544 = vand.u32 %v506, 4294901760
    %545 = vmatpush1.msra.mxu0 %v544
    %546 = vmatprep.subr.mxu0 0.0
    %v547 = vand.u32 %v507, 4294901760
    %548 = vmatpush1.msra.mxu0 %v547
    %549 = vmatprep.subr.mxu0 0.0
    %v550 = vand.u32 %v508, 4294901760
    %551 = vmatpush1.msra.mxu0 %v550
    %552 = vmatprep.subr.mxu0 0.0
    %v553 = vand.u32 %v509, 4294901760
    %554 = vmatpush1.msra.mxu0 %v553
    %555 = vmatprep.subr.mxu0 0.0
    %v556 = vand.u32 %v510, 4294901760
    %557 = vmatpush1.msra.mxu0 %v556
    %558 = vmatprep.subr.mxu0 0.0
    %v559 = vand.u32 %v511, 4294901760
    %560 = vmatpush1.msra.mxu0 %v559
    %561 = vmatprep.subr.mxu0 0.0
    %v562 = vand.u32 %v512, 4294901760
    %563 = vmatpush1.msra.mxu0 %v562
    %564 = vmatprep.subr.mxu0 0.0
    %v565 = vand.u32 %v513, 4294901760
    %566 = vmatpush1.msra.mxu0 %v565
    %567 = vmatprep.subr.mxu0 0.0
    %v568 = vand.u32 %v514, 4294901760
    %569 = vmatpush1.msra.mxu0 %v568
    %570 = vmatprep.subr.mxu0 0.0
    %571 = vmatpush1.msra.mxu0 0.0
    %572 = vmatprep.subr.mxu0 0.0
    %573 = vmatpush1.msra.mxu0 0.0
    %574 = vmatprep.subr.mxu0 0.0
    %575 = vmatpush1.msra.mxu0 0.0
    %576 = vmatprep.subr.mxu0 0.0
    %577 = vmatpush1.msra.mxu0 0.0
    %578 = vmatprep.subr.mxu0 0.0
    %579 = vmatpush1.msra.mxu0 0.0
    %580 = vmatprep.subr.mxu0 0.0
    %581 = vmatpush1.msra.mxu0 0.0
    %582 = vmatprep.subr.mxu0 0.0
    %583 = vmatpush1.msra.mxu0 0.0
    %584 = vmatprep.subr.mxu0 0.0
    %585 = vmatpush1.msra.mxu0 0.0
    %586 = vmatprep.subr.mxu0 0.0
    %587 = vmatpush1.msra.mxu0 0.0
    %588 = vmatprep.subr.mxu0 0.0
    %589 = vmatpush1.msra.mxu0 0.0
    %590 = vmatprep.subr.mxu0 0.0
    %591 = vmatpush1.msra.mxu0 0.0
    %592 = vmatprep.subr.mxu0 0.0
    %593 = vmatpush1.msra.mxu0 0.0
    %594 = vmatprep.subr.mxu0 0.0
    %595 = vmatpush1.msra.mxu0 0.0
    %596 = vmatprep.subr.mxu0 0.0
    %597 = vmatpush1.msra.mxu0 0.0
    %598 = vmatprep.subr.mxu0 0.0
    %599 = vmatpush1.msra.mxu0 0.0
    %600 = vmatprep.subr.mxu0 0.0
    %601 = vmatpush1.msra.mxu0 0.0
    %602 = vmatprep.mubr.f32.mxu0 0.0
    %v603 = vand.u32 %v498, 4294901760
    %v604 = vsub.f32 %v498, %v603
    %v605 = vand.u32 %v604, 4294901760
    %v606 = vsub.f32 %v604, %v605
    %v607 = vand.u32 %v606, 4294901760
    %608 = vmatmul.mubr.f32.gmra.mrb[0].mxu0 %v607
    %v609 = vpop.f32.mrb[0].mxu0
    %v610 = vadd.f32 %v520, %v609
    %v611 = vpop.f32.mrb[0].mxu0
    %612 = vdwg.mxu0
    %613 = vmatprep.subr.mxu0 0.0
    %v614 = vand.u32 %v499, 4294901760
    %v615 = vsub.f32 %v499, %v614
    %v616 = vand.u32 %v615, 4294901760
    %v617 = vsub.f32 %v615, %v616
    %v618 = vand.u32 %v617, 4294901760
    %619 = vmatpush1.msra.mxu0 %v618
    %620 = vmatprep.subr.mxu0 0.0
    %v621 = vand.u32 %v500, 4294901760
    %v622 = vsub.f32 %v500, %v621
    %v623 = vand.u32 %v622, 4294901760
    %v624 = vsub.f32 %v622, %v623
    %v625 = vand.u32 %v624, 4294901760
    %626 = vmatpush1.msra.mxu0 %v625
    %627 = vmatprep.subr.mxu0 0.0
    %v628 = vand.u32 %v501, 4294901760
    %v629 = vsub.f32 %v501, %v628
    %v630 = vand.u32 %v629, 4294901760
    %v631 = vsub.f32 %v629, %v630
    %v632 = vand.u32 %v631, 4294901760
    %633 = vmatpush1.msra.mxu0 %v632
    %634 = vmatprep.subr.mxu0 0.0
    %v635 = vand.u32 %v502, 4294901760
    %v636 = vsub.f32 %v502, %v635
    %v637 = vand.u32 %v636, 4294901760
    %v638 = vsub.f32 %v636, %v637
    %v639 = vand.u32 %v638, 4294901760
    %640 = vmatpush1.msra.mxu0 %v639
    %641 = vmatprep.subr.mxu0 0.0
    %v642 = vand.u32 %v503, 4294901760
    %v643 = vsub.f32 %v503, %v642
    %v644 = vand.u32 %v643, 4294901760
    %v645 = vsub.f32 %v643, %v644
    %v646 = vand.u32 %v645, 4294901760
    %647 = vmatpush1.msra.mxu0 %v646
    %648 = vmatprep.subr.mxu0 0.0
    %v649 = vand.u32 %v504, 4294901760
    %v650 = vsub.f32 %v504, %v649
    %v651 = vand.u32 %v650, 4294901760
    %v652 = vsub.f32 %v650, %v651
    %v653 = vand.u32 %v652, 4294901760
    %654 = vmatpush1.msra.mxu0 %v653
    %655 = vmatprep.subr.mxu0 0.0
    %v656 = vand.u32 %v505, 4294901760
    %v657 = vsub.f32 %v505, %v656
    %v658 = vand.u32 %v657, 4294901760
    %v659 = vsub.f32 %v657, %v658
    %v660 = vand.u32 %v659, 4294901760
    %661 = vmatpush1.msra.mxu0 %v660
    %662 = vmatprep.subr.mxu0 0.0
    %v663 = vand.u32 %v506, 4294901760
    %v664 = vsub.f32 %v506, %v663
    %v665 = vand.u32 %v664, 4294901760
    %v666 = vsub.f32 %v664, %v665
    %v667 = vand.u32 %v666, 4294901760
    %668 = vmatpush1.msra.mxu0 %v667
    %669 = vmatprep.subr.mxu0 0.0
    %v670 = vand.u32 %v507, 4294901760
    %v671 = vsub.f32 %v507, %v670
    %v672 = vand.u32 %v671, 4294901760
    %v673 = vsub.f32 %v671, %v672
    %v674 = vand.u32 %v673, 4294901760
    %675 = vmatpush1.msra.mxu0 %v674
    %676 = vmatprep.subr.mxu0 0.0
    %v677 = vand.u32 %v508, 4294901760
    %v678 = vsub.f32 %v508, %v677
    %v679 = vand.u32 %v678, 4294901760
    %v680 = vsub.f32 %v678, %v679
    %v681 = vand.u32 %v680, 4294901760
    %682 = vmatpush1.msra.mxu0 %v681
    %683 = vmatprep.subr.mxu0 0.0
    %v684 = vand.u32 %v509, 4294901760
    %v685 = vsub.f32 %v509, %v684
    %v686 = vand.u32 %v685, 4294901760
    %v687 = vsub.f32 %v685, %v686
    %v688 = vand.u32 %v687, 4294901760
    %689 = vmatpush1.msra.mxu0 %v688
    %690 = vmatprep.subr.mxu0 0.0
    %v691 = vand.u32 %v510, 4294901760
    %v692 = vsub.f32 %v510, %v691
    %v693 = vand.u32 %v692, 4294901760
    %v694 = vsub.f32 %v692, %v693
    %v695 = vand.u32 %v694, 4294901760
    %696 = vmatpush1.msra.mxu0 %v695
    %697 = vmatprep.subr.mxu0 0.0
    %v698 = vand.u32 %v511, 4294901760
    %v699 = vsub.f32 %v511, %v698
    %v700 = vand.u32 %v699, 4294901760
    %v701 = vsub.f32 %v699, %v700
    %v702 = vand.u32 %v701, 4294901760
    %703 = vmatpush1.msra.mxu0 %v702
    %704 = vmatprep.subr.mxu0 0.0
    %v705 = vand.u32 %v512, 4294901760
    %v706 = vsub.f32 %v512, %v705
    %v707 = vand.u32 %v706, 4294901760
    %v708 = vsub.f32 %v706, %v707
    %v709 = vand.u32 %v708, 4294901760
    %710 = vmatpush1.msra.mxu0 %v709
    %711 = vmatprep.subr.mxu0 0.0
    %v712 = vand.u32 %v513, 4294901760
    %v713 = vsub.f32 %v513, %v712
    %v714 = vand.u32 %v713, 4294901760
    %v715 = vsub.f32 %v713, %v714
    %v716 = vand.u32 %v715, 4294901760
    %717 = vmatpush1.msra.mxu0 %v716
    %718 = vmatprep.subr.mxu0 0.0
    %v719 = vand.u32 %v514, 4294901760
    %v720 = vsub.f32 %v514, %v719
    %v721 = vand.u32 %v720, 4294901760
    %v722 = vsub.f32 %v720, %v721
    %v723 = vand.u32 %v722, 4294901760
    %724 = vmatpush1.msra.mxu0 %v723
    %725 = vmatprep.subr.mxu0 0.0
    %726 = vmatpush1.msra.mxu0 0.0
    %727 = vmatprep.subr.mxu0 0.0
    %728 = vmatpush1.msra.mxu0 0.0
    %729 = vmatprep.subr.mxu0 0.0
    %730 = vmatpush1.msra.mxu0 0.0
    %731 = vmatprep.subr.mxu0 0.0
    %732 = vmatpush1.msra.mxu0 0.0
    %733 = vmatprep.subr.mxu0 0.0
    %734 = vmatpush1.msra.mxu0 0.0
    %735 = vmatprep.subr.mxu0 0.0
    %736 = vmatpush1.msra.mxu0 0.0
    %737 = vmatprep.subr.mxu0 0.0
    %738 = vmatpush1.msra.mxu0 0.0
    %739 = vmatprep.subr.mxu0 0.0
    %740 = vmatpush1.msra.mxu0 0.0
    %741 = vmatprep.subr.mxu0 0.0
    %742 = vmatpush1.msra.mxu0 0.0
    %743 = vmatprep.subr.mxu0 0.0
    %744 = vmatpush1.msra.mxu0 0.0
    %745 = vmatprep.subr.mxu0 0.0
    %746 = vmatpush1.msra.mxu0 0.0
    %747 = vmatprep.subr.mxu0 0.0
    %748 = vmatpush1.msra.mxu0 0.0
    %749 = vmatprep.subr.mxu0 0.0
    %750 = vmatpush1.msra.mxu0 0.0
    %751 = vmatprep.subr.mxu0 0.0
    %752 = vmatpush1.msra.mxu0 0.0
    %753 = vmatprep.subr.mxu0 0.0
    %754 = vmatpush1.msra.mxu0 0.0
    %755 = vmatprep.subr.mxu0 0.0
    %756 = vmatpush1.msra.mxu0 0.0
    %757 = vmatprep.mubr.f32.mxu0 0.0
    %v758 = vand.u32 %v498, 4294901760
    %759 = vmatmul.mubr.f32.gmra.mrb[0].mxu0 %v758
    %v760 = vpop.f32.mrb[0].mxu0
    %v761 = vadd.f32 %v610, %v760
    %v762 = vpop.f32.mrb[0].mxu0
    %763 = vdwg.mxu0
    %764 = vmatprep.subr.mxu0 0.0
    %v765 = vand.u32 %v499, 4294901760
    %v766 = vsub.f32 %v499, %v765
    %767 = vmatpush1.msra.mxu0 %v766
    %768 = vmatprep.subr.mxu0 0.0
    %v769 = vand.u32 %v500, 4294901760
    %v770 = vsub.f32 %v500, %v769
    %771 = vmatpush1.msra.mxu0 %v770
    %772 = vmatprep.subr.mxu0 0.0
    %v773 = vand.u32 %v501, 4294901760
    %v774 = vsub.f32 %v501, %v773
    %775 = vmatpush1.msra.mxu0 %v774
    %776 = vmatprep.subr.mxu0 0.0
    %v777 = vand.u32 %v502, 4294901760
    %v778 = vsub.f32 %v502, %v777
    %779 = vmatpush1.msra.mxu0 %v778
    %780 = vmatprep.subr.mxu0 0.0
    %v781 = vand.u32 %v503, 4294901760
    %v782 = vsub.f32 %v503, %v781
    %783 = vmatpush1.msra.mxu0 %v782
    %784 = vmatprep.subr.mxu0 0.0
    %v785 = vand.u32 %v504, 4294901760
    %v786 = vsub.f32 %v504, %v785
    %787 = vmatpush1.msra.mxu0 %v786
    %788 = vmatprep.subr.mxu0 0.0
    %v789 = vand.u32 %v505, 4294901760
    %v790 = vsub.f32 %v505, %v789
    %791 = vmatpush1.msra.mxu0 %v790
    %792 = vmatprep.subr.mxu0 0.0
    %v793 = vand.u32 %v506, 4294901760
    %v794 = vsub.f32 %v506, %v793
    %795 = vmatpush1.msra.mxu0 %v794
    %796 = vmatprep.subr.mxu0 0.0
    %v797 = vand.u32 %v507, 4294901760
    %v798 = vsub.f32 %v507, %v797
    %799 = vmatpush1.msra.mxu0 %v798
    %800 = vmatprep.subr.mxu0 0.0
    %v801 = vand.u32 %v508, 4294901760
    %v802 = vsub.f32 %v508, %v801
    %803 = vmatpush1.msra.mxu0 %v802
    %804 = vmatprep.subr.mxu0 0.0
    %v805 = vand.u32 %v509, 4294901760
    %v806 = vsub.f32 %v509, %v805
    %807 = vmatpush1.msra.mxu0 %v806
    %808 = vmatprep.subr.mxu0 0.0
    %v809 = vand.u32 %v510, 4294901760
    %v810 = vsub.f32 %v510, %v809
    %811 = vmatpush1.msra.mxu0 %v810
    %812 = vmatprep.subr.mxu0 0.0
    %v813 = vand.u32 %v511, 4294901760
    %v814 = vsub.f32 %v511, %v813
    %815 = vmatpush1.msra.mxu0 %v814
    %816 = vmatprep.subr.mxu0 0.0
    %v817 = vand.u32 %v512, 4294901760
    %v818 = vsub.f32 %v512, %v817
    %819 = vmatpush1.msra.mxu0 %v818
    %820 = vmatprep.subr.mxu0 0.0
    %v821 = vand.u32 %v513, 4294901760
    %v822 = vsub.f32 %v513, %v821
    %823 = vmatpush1.msra.mxu0 %v822
    %824 = vmatprep.subr.mxu0 0.0
    %v825 = vand.u32 %v514, 4294901760
    %v826 = vsub.f32 %v514, %v825
    %827 = vmatpush1.msra.mxu0 %v826
    %828 = vmatprep.subr.mxu0 0.0
    %829 = vmatpush1.msra.mxu0 0.0
    %830 = vmatprep.subr.mxu0 0.0
    %831 = vmatpush1.msra.mxu0 0.0
    %832 = vmatprep.subr.mxu0 0.0
    %833 = vmatpush1.msra.mxu0 0.0
    %834 = vmatprep.subr.mxu0 0.0
    %835 = vmatpush1.msra.mxu0 0.0
    %836 = vmatprep.subr.mxu0 0.0
    %837 = vmatpush1.msra.mxu0 0.0
    %838 = vmatprep.subr.mxu0 0.0
    %839 = vmatpush1.msra.mxu0 0.0
    %840 = vmatprep.subr.mxu0 0.0
    %841 = vmatpush1.msra.mxu0 0.0
    %842 = vmatprep.subr.mxu0 0.0
    %843 = vmatpush1.msra.mxu0 0.0
    %844 = vmatprep.subr.mxu0 0.0
    %845 = vmatpush1.msra.mxu0 0.0
    %846 = vmatprep.subr.mxu0 0.0
    %847 = vmatpush1.msra.mxu0 0.0
    %848 = vmatprep.subr.mxu0 0.0
    %849 = vmatpush1.msra.mxu0 0.0
    %850 = vmatprep.subr.mxu0 0.0
    %851 = vmatpush1.msra.mxu0 0.0
    %852 = vmatprep.subr.mxu0 0.0
    %853 = vmatpush1.msra.mxu0 0.0
    %854 = vmatprep.subr.mxu0 0.0
    %855 = vmatpush1.msra.mxu0 0.0
    %856 = vmatprep.subr.mxu0 0.0
    %857 = vmatpush1.msra.mxu0 0.0
    %858 = vmatprep.subr.mxu0 0.0
    %859 = vmatpush1.msra.mxu0 0.0
    %860 = vmatprep.mubr.f32.mxu0 0.0
    %v861 = vand.u32 %v498, 4294901760
    %v862 = vsub.f32 %v498, %v861
    %863 = vmatmul.mubr.f32.gmra.mrb[0].mxu0 %v862
    %v864 = vpop.f32.mrb[0].mxu0
    %v865 = vadd.f32 %v761, %v864
    %v866 = vpop.f32.mrb[0].mxu0
    %867 = vdwg.mxu0
    %868 = vmatprep.subr.mxu0 0.0
    %v869 = vand.u32 %v499, 4294901760
    %870 = vmatpush1.msra.mxu0 %v869
    %871 = vmatprep.subr.mxu0 0.0
    %v872 = vand.u32 %v500, 4294901760
    %873 = vmatpush1.msra.mxu0 %v872
    %874 = vmatprep.subr.mxu0 0.0
    %v875 = vand.u32 %v501, 4294901760
    %876 = vmatpush1.msra.mxu0 %v875
    %877 = vmatprep.subr.mxu0 0.0
    %v878 = vand.u32 %v502, 4294901760
    %879 = vmatpush1.msra.mxu0 %v878
    %880 = vmatprep.subr.mxu0 0.0
    %v881 = vand.u32 %v503, 4294901760
    %882 = vmatpush1.msra.mxu0 %v881
    %883 = vmatprep.subr.mxu0 0.0
    %v884 = vand.u32 %v504, 4294901760
    %885 = vmatpush1.msra.mxu0 %v884
    %886 = vmatprep.subr.mxu0 0.0
    %v887 = vand.u32 %v505, 4294901760
    %888 = vmatpush1.msra.mxu0 %v887
    %889 = vmatprep.subr.mxu0 0.0
    %v890 = vand.u32 %v506, 4294901760
    %891 = vmatpush1.msra.mxu0 %v890
    %892 = vmatprep.subr.mxu0 0.0
    %v893 = vand.u32 %v507, 4294901760
    %894 = vmatpush1.msra.mxu0 %v893
    %895 = vmatprep.subr.mxu0 0.0
    %v896 = vand.u32 %v508, 4294901760
    %897 = vmatpush1.msra.mxu0 %v896
    %898 = vmatprep.subr.mxu0 0.0
    %v899 = vand.u32 %v509, 4294901760
    %900 = vmatpush1.msra.mxu0 %v899
    %901 = vmatprep.subr.mxu0 0.0
    %v902 = vand.u32 %v510, 4294901760
    %903 = vmatpush1.msra.mxu0 %v902
    %904 = vmatprep.subr.mxu0 0.0
    %v905 = vand.u32 %v511, 4294901760
    %906 = vmatpush1.msra.mxu0 %v905
    %907 = vmatprep.subr.mxu0 0.0
    %v908 = vand.u32 %v512, 4294901760
    %909 = vmatpush1.msra.mxu0 %v908
    %910 = vmatprep.subr.mxu0 0.0
    %v911 = vand.u32 %v513, 4294901760
    %912 = vmatpush1.msra.mxu0 %v911
    %913 = vmatprep.subr.mxu0 0.0
    %v914 = vand.u32 %v514, 4294901760
    %915 = vmatpush1.msra.mxu0 %v914
    %916 = vmatprep.subr.mxu0 0.0
    %917 = vmatpush1.msra.mxu0 0.0
    %918 = vmatprep.subr.mxu0 0.0
    %919 = vmatpush1.msra.mxu0 0.0
    %920 = vmatprep.subr.mxu0 0.0
    %921 = vmatpush1.msra.mxu0 0.0
    %922 = vmatprep.subr.mxu0 0.0
    %923 = vmatpush1.msra.mxu0 0.0
    %924 = vmatprep.subr.mxu0 0.0
    %925 = vmatpush1.msra.mxu0 0.0
    %926 = vmatprep.subr.mxu0 0.0
    %927 = vmatpush1.msra.mxu0 0.0
    %928 = vmatprep.subr.mxu0 0.0
    %929 = vmatpush1.msra.mxu0 0.0
    %930 = vmatprep.subr.mxu0 0.0
    %931 = vmatpush1.msra.mxu0 0.0
    %932 = vmatprep.subr.mxu0 0.0
    %933 = vmatpush1.msra.mxu0 0.0
    %934 = vmatprep.subr.mxu0 0.0
    %935 = vmatpush1.msra.mxu0 0.0
    %936 = vmatprep.subr.mxu0 0.0
    %937 = vmatpush1.msra.mxu0 0.0
    %938 = vmatprep.subr.mxu0 0.0
    %939 = vmatpush1.msra.mxu0 0.0
    %940 = vmatprep.subr.mxu0 0.0
    %941 = vmatpush1.msra.mxu0 0.0
    %942 = vmatprep.subr.mxu0 0.0
    %943 = vmatpush1.msra.mxu0 0.0
    %944 = vmatprep.subr.mxu0 0.0
    %945 = vmatpush1.msra.mxu0 0.0
    %946 = vmatprep.subr.mxu0 0.0
    %947 = vmatpush1.msra.mxu0 0.0
    %948 = vmatprep.mubr.f32.mxu0 0.0
    %v949 = vand.u32 %v498, 4294901760
    %v950 = vsub.f32 %v498, %v949
    %v951 = vand.u32 %v950, 4294901760
    %952 = vmatmul.mubr.f32.gmra.mrb[0].mxu0 %v951
    %v953 = vpop.f32.mrb[0].mxu0
    %v954 = vadd.f32 %v865, %v953
    %v955 = vpop.f32.mrb[0].mxu0
    %956 = vdwg.mxu0
    %957 = vmatprep.subr.mxu0 0.0
    %v958 = vand.u32 %v499, 4294901760
    %v959 = vsub.f32 %v499, %v958
    %v960 = vand.u32 %v959, 4294901760
    %961 = vmatpush1.msra.mxu0 %v960
    %962 = vmatprep.subr.mxu0 0.0
    %v963 = vand.u32 %v500, 4294901760
    %v964 = vsub.f32 %v500, %v963
    %v965 = vand.u32 %v964, 4294901760
    %966 = vmatpush1.msra.mxu0 %v965
    %967 = vmatprep.subr.mxu0 0.0
    %v968 = vand.u32 %v501, 4294901760
    %v969 = vsub.f32 %v501, %v968
    %v970 = vand.u32 %v969, 4294901760
    %971 = vmatpush1.msra.mxu0 %v970
    %972 = vmatprep.subr.mxu0 0.0
    %v973 = vand.u32 %v502, 4294901760
    %v974 = vsub.f32 %v502, %v973
    %v975 = vand.u32 %v974, 4294901760
    %976 = vmatpush1.msra.mxu0 %v975
    %977 = vmatprep.subr.mxu0 0.0
    %v978 = vand.u32 %v503, 4294901760
    %v979 = vsub.f32 %v503, %v978
    %v980 = vand.u32 %v979, 4294901760
    %981 = vmatpush1.msra.mxu0 %v980
    %982 = vmatprep.subr.mxu0 0.0
    %v983 = vand.u32 %v504, 4294901760
    %v984 = vsub.f32 %v504, %v983
    %v985 = vand.u32 %v984, 4294901760
    %986 = vmatpush1.msra.mxu0 %v985
    %987 = vmatprep.subr.mxu0 0.0
    %v988 = vand.u32 %v505, 4294901760
    %v989 = vsub.f32 %v505, %v988
    %v990 = vand.u32 %v989, 4294901760
    %991 = vmatpush1.msra.mxu0 %v990
    %992 = vmatprep.subr.mxu0 0.0
    %v993 = vand.u32 %v506, 4294901760
    %v994 = vsub.f32 %v506, %v993
    %v995 = vand.u32 %v994, 4294901760
    %996 = vmatpush1.msra.mxu0 %v995
    %997 = vmatprep.subr.mxu0 0.0
    %v998 = vand.u32 %v507, 4294901760
    %v999 = vsub.f32 %v507, %v998
    %v1000 = vand.u32 %v999, 4294901760
    %1001 = vmatpush1.msra.mxu0 %v1000
    %1002 = vmatprep.subr.mxu0 0.0
    %v1003 = vand.u32 %v508, 4294901760
    %v1004 = vsub.f32 %v508, %v1003
    %v1005 = vand.u32 %v1004, 4294901760
    %1006 = vmatpush1.msra.mxu0 %v1005
    %1007 = vmatprep.subr.mxu0 0.0
    %v1008 = vand.u32 %v509, 4294901760
    %v1009 = vsub.f32 %v509, %v1008
    %v1010 = vand.u32 %v1009, 4294901760
    %1011 = vmatpush1.msra.mxu0 %v1010
    %1012 = vmatprep.subr.mxu0 0.0
    %v1013 = vand.u32 %v510, 4294901760
    %v1014 = vsub.f32 %v510, %v1013
    %v1015 = vand.u32 %v1014, 4294901760
    %1016 = vmatpush1.msra.mxu0 %v1015
    %1017 = vmatprep.subr.mxu0 0.0
    %v1018 = vand.u32 %v511, 4294901760
    %v1019 = vsub.f32 %v511, %v1018
    %v1020 = vand.u32 %v1019, 4294901760
    %1021 = vmatpush1.msra.mxu0 %v1020
    %1022 = vmatprep.subr.mxu0 0.0
    %v1023 = vand.u32 %v512, 4294901760
    %v1024 = vsub.f32 %v512, %v1023
    %v1025 = vand.u32 %v1024, 4294901760
    %1026 = vmatpush1.msra.mxu0 %v1025
    %1027 = vmatprep.subr.mxu0 0.0
    %v1028 = vand.u32 %v513, 4294901760
    %v1029 = vsub.f32 %v513, %v1028
    %v1030 = vand.u32 %v1029, 4294901760
    %1031 = vmatpush1.msra.mxu0 %v1030
    %1032 = vmatprep.subr.mxu0 0.0
    %v1033 = vand.u32 %v514, 4294901760
    %v1034 = vsub.f32 %v514, %v1033
    %v1035 = vand.u32 %v1034, 4294901760
    %1036 = vmatpush1.msra.mxu0 %v1035
    %1037 = vmatprep.subr.mxu0 0.0
    %1038 = vmatpush1.msra.mxu0 0.0
    %1039 = vmatprep.subr.mxu0 0.0
    %1040 = vmatpush1.msra.mxu0 0.0
    %1041 = vmatprep.subr.mxu0 0.0
    %1042 = vmatpush1.msra.mxu0 0.0
    %1043 = vmatprep.subr.mxu0 0.0
    %1044 = vmatpush1.msra.mxu0 0.0
    %1045 = vmatprep.subr.mxu0 0.0
    %1046 = vmatpush1.msra.mxu0 0.0
    %1047 = vmatprep.subr.mxu0 0.0
    %1048 = vmatpush1.msra.mxu0 0.0
    %1049 = vmatprep.subr.mxu0 0.0
    %1050 = vmatpush1.msra.mxu0 0.0
    %1051 = vmatprep.subr.mxu0 0.0
    %1052 = vmatpush1.msra.mxu0 0.0
    %1053 = vmatprep.subr.mxu0 0.0
    %1054 = vmatpush1.msra.mxu0 0.0
    %1055 = vmatprep.subr.mxu0 0.0
    %1056 = vmatpush1.msra.mxu0 0.0
    %1057 = vmatprep.subr.mxu0 0.0
    %1058 = vmatpush1.msra.mxu0 0.0
    %1059 = vmatprep.subr.mxu0 0.0
    %1060 = vmatpush1.msra.mxu0 0.0
    %1061 = vmatprep.subr.mxu0 0.0
    %1062 = vmatpush1.msra.mxu0 0.0
    %1063 = vmatprep.subr.mxu0 0.0
    %1064 = vmatpush1.msra.mxu0 0.0
    %1065 = vmatprep.subr.mxu0 0.0
    %1066 = vmatpush1.msra.mxu0 0.0
    %1067 = vmatprep.subr.mxu0 0.0
    %1068 = vmatpush1.msra.mxu0 0.0
    %1069 = vmatprep.mubr.f32.mxu0 0.0
    %v1070 = vand.u32 %v498, 4294901760
    %1071 = vmatmul.mubr.f32.gmra.mrb[0].mxu0 %v1070
    %v1072 = vpop.f32.mrb[0].mxu0
    %v1073 = vadd.f32 %v954, %v1072
    %v1074 = vpop.f32.mrb[0].mxu0
    %1075 = vdwg.mxu0
    %1076 = vmatprep.subr.mxu0 0.0
    %v1077 = vand.u32 %v499, 4294901760
    %1078 = vmatpush1.msra.mxu0 %v1077
    %1079 = vmatprep.subr.mxu0 0.0
    %v1080 = vand.u32 %v500, 4294901760
    %1081 = vmatpush1.msra.mxu0 %v1080
    %1082 = vmatprep.subr.mxu0 0.0
    %v1083 = vand.u32 %v501, 4294901760
    %1084 = vmatpush1.msra.mxu0 %v1083
    %1085 = vmatprep.subr.mxu0 0.0
    %v1086 = vand.u32 %v502, 4294901760
    %1087 = vmatpush1.msra.mxu0 %v1086
    %1088 = vmatprep.subr.mxu0 0.0
    %v1089 = vand.u32 %v503, 4294901760
    %1090 = vmatpush1.msra.mxu0 %v1089
    %1091 = vmatprep.subr.mxu0 0.0
    %v1092 = vand.u32 %v504, 4294901760
    %1093 = vmatpush1.msra.mxu0 %v1092
    %1094 = vmatprep.subr.mxu0 0.0
    %v1095 = vand.u32 %v505, 4294901760
    %1096 = vmatpush1.msra.mxu0 %v1095
    %1097 = vmatprep.subr.mxu0 0.0
    %v1098 = vand.u32 %v506, 4294901760
    %1099 = vmatpush1.msra.mxu0 %v1098
    %1100 = vmatprep.subr.mxu0 0.0
    %v1101 = vand.u32 %v507, 4294901760
    %1102 = vmatpush1.msra.mxu0 %v1101
    %1103 = vmatprep.subr.mxu0 0.0
    %v1104 = vand.u32 %v508, 4294901760
    %1105 = vmatpush1.msra.mxu0 %v1104
    %1106 = vmatprep.subr.mxu0 0.0
    %v1107 = vand.u32 %v509, 4294901760
    %1108 = vmatpush1.msra.mxu0 %v1107
    %1109 = vmatprep.subr.mxu0 0.0
    %v1110 = vand.u32 %v510, 4294901760
    %1111 = vmatpush1.msra.mxu0 %v1110
    %1112 = vmatprep.subr.mxu0 0.0
    %v1113 = vand.u32 %v511, 4294901760
    %1114 = vmatpush1.msra.mxu0 %v1113
    %1115 = vmatprep.subr.mxu0 0.0
    %v1116 = vand.u32 %v512, 4294901760
    %1117 = vmatpush1.msra.mxu0 %v1116
    %1118 = vmatprep.subr.mxu0 0.0
    %v1119 = vand.u32 %v513, 4294901760
    %1120 = vmatpush1.msra.mxu0 %v1119
    %1121 = vmatprep.subr.mxu0 0.0
    %v1122 = vand.u32 %v514, 4294901760
    %1123 = vmatpush1.msra.mxu0 %v1122
    %1124 = vmatprep.subr.mxu0 0.0
    %1125 = vmatpush1.msra.mxu0 0.0
    %1126 = vmatprep.subr.mxu0 0.0
    %1127 = vmatpush1.msra.mxu0 0.0
    %1128 = vmatprep.subr.mxu0 0.0
    %1129 = vmatpush1.msra.mxu0 0.0
    %1130 = vmatprep.subr.mxu0 0.0
    %1131 = vmatpush1.msra.mxu0 0.0
    %1132 = vmatprep.subr.mxu0 0.0
    %1133 = vmatpush1.msra.mxu0 0.0
    %1134 = vmatprep.subr.mxu0 0.0
    %1135 = vmatpush1.msra.mxu0 0.0
    %1136 = vmatprep.subr.mxu0 0.0
    %1137 = vmatpush1.msra.mxu0 0.0
    %1138 = vmatprep.subr.mxu0 0.0
    %1139 = vmatpush1.msra.mxu0 0.0
    %1140 = vmatprep.subr.mxu0 0.0
    %1141 = vmatpush1.msra.mxu0 0.0
    %1142 = vmatprep.subr.mxu0 0.0
    %1143 = vmatpush1.msra.mxu0 0.0
    %1144 = vmatprep.subr.mxu0 0.0
    %1145 = vmatpush1.msra.mxu0 0.0
    %1146 = vmatprep.subr.mxu0 0.0
    %1147 = vmatpush1.msra.mxu0 0.0
    %1148 = vmatprep.subr.mxu0 0.0
    %1149 = vmatpush1.msra.mxu0 0.0
    %1150 = vmatprep.subr.mxu0 0.0
    %1151 = vmatpush1.msra.mxu0 0.0
    %1152 = vmatprep.subr.mxu0 0.0
    %1153 = vmatpush1.msra.mxu0 0.0
    %1154 = vmatprep.subr.mxu0 0.0
    %1155 = vmatpush1.msra.mxu0 0.0
    %1156 = vmatprep.mubr.f32.mxu0 0.0
    %v1157 = vand.u32 %v498, 4294901760
    %1158 = vmatmul.mubr.f32.gmra.mrb[0].mxu0 %v1157
    %v1159 = vpop.f32.mrb[0].mxu0
    %v1160 = vadd.f32 %v1073, %v1159
    %v1161 = vpop.f32.mrb[0].mxu0
    %1162 = vdwg.mxu0
    %1163 = vst [vmem:[#allocation5] sm:$0xff] %v1160
    // Predicated region
    $region26: #{fused_linear_relu_linear.1} parent=1 // pred_check
      _
    $region27: #{fused_linear_relu_linear.1} parent=1 // pred_check_branch
      %1165 = sbr.rel (0) target = $region29
    $region28: #{fused_linear_relu_linear.1} parent=1 // pred_region
      %s1167 = ssub.s32 128, 128
      %1168 = vsyncadd [#allocation4], %s1167
      %s1170 = sshll.u32 [#allocation5], 4
      %s1171 = int_to_ptr.vmem [resolvable:$true] %s1170
      %1173 = dma.vmem_to_hbm [thread:$0]  %s1171, 128, %s5, [#allocation4]
    $region29: #{fused_linear_relu_linear.1} parent=1 // pred_fallthru
      _
    // Predicated region
    $region30: #{fused_linear_relu_linear.1} parent=1 // pred_check
      _
    $region31: #{fused_linear_relu_linear.1} parent=1 // pred_check_branch
      %1175 = sbr.rel (0) target = $region33
    $region32: #{fused_linear_relu_linear.1} parent=1 // pred_region
      %1176 = dma.done [#allocation4], 128
    $region33: #{fused_linear_relu_linear.1} parent=1 // pred_fallthru
      _
    %1177 = vsyncpa [#allocation3], 1
    %1178 = vsyncpa [#allocation4], 1

</llo_original>
